<compile_context>
chip_gen: v7x
topology: tpu7x:2x2x1
jax: 0.10.0
libtpu: 0.0.40
codegen_flags: <defaults>
</compile_context>

<pallas_src>
import jax
import jax.numpy as jnp
from jax.experimental import pallas as pl
from jax.experimental.pallas import tpu as pltpu


_NEG_SLOPE = 0.01  # PyTorch nn.LeakyReLU default negative_slope


def _cdiv(a, b):
    return -(-a // b)


def _leaky_relu(x):
    return jnp.where(x > 0, x, jnp.float32(_NEG_SLOPE) * x)


def generator_kernel(x_ref, w1_ref, b1_ref, w2_ref, b2_ref, w3_ref, b3_ref, o_ref):
    """One batch tile (batch in lanes) of linear->lrelu->linear->lrelu->linear.

    x_ref : (L, TB)  bf16   w1_ref: (64, L) bf16   b1_ref: (64, 1) f32
    w2_ref: (32, 64) bf16   b2_ref: (32, 1) f32
    w3_ref: (32, 1)  f32    b3_ref: (1, 1)  f32    o_ref : (1, TB) f32
    """
    # Layer 1 on the MXU: (64, L) @ (L, TB) -> (64, TB), f32 accumulation.
    h = jnp.dot(w1_ref[...], x_ref[...], preferred_element_type=jnp.float32)
    h = _leaky_relu(h + b1_ref[...])

    # Layer 2 on the MXU: (32, 64) @ (64, TB) -> (32, TB).
    h = jnp.dot(w2_ref[...], h.astype(jnp.bfloat16),
                preferred_element_type=jnp.float32)
    h = _leaky_relu(h + b2_ref[...])

    # Layer 3 (32 -> 1) on VPU/XLU: broadcast multiply + sublane reduction.
    y = jnp.sum(h * w3_ref[...], axis=0, keepdims=True) + b3_ref[...]

    # output_activation is None in this configuration -> identity.
    o_ref[...] = y.astype(o_ref.dtype)


def _choose_tiling(batch, block_batch):
    """Pick (num_steps, tile_batch): tile multiple of 128, minimal padding,
    prefer an even step count (v7x: 2 TCs share the parallel axis)."""
    units = _cdiv(batch, 128)                  # batch in 128-row units
    max_units = max(1, block_batch // 128)
    n_min = _cdiv(units, max_units)
    best_key, best = None, None
    for n in range(n_min, n_min + 64):
        if n > units and n > n_min:
            break
        tbu = _cdiv(units, n)
        if tbu > max_units:
            continue
        pad = n * tbu * 128 - batch
        odd_penalty = 0 if (n % 2 == 0 or units == 1) else 1
        key = (pad, odd_penalty, n)
        if best_key is None or key < best_key:
            best_key, best = key, (n, tbu * 128)
    return best


def generator_forward(x, params, *, block_batch=2048):
    """Batched forward pass. x: (batch, latent_dim) f32 -> (batch, 1) f32."""
    w1, b1, w2, b2, w3, b3 = params            # PyTorch nn.Linear layout
    batch, latent_dim = x.shape
    h1 = w1.shape[0]                           # 64
    h2 = w2.shape[0]                           # 32

    n_steps, tb = _choose_tiling(batch, block_batch)
    padded = n_steps * tb

    # Batch in lanes: feed x pre-transposed (latent, batch), bf16 for the MXU.
    x_t = x.T.astype(jnp.bfloat16)
    if padded != batch:
        x_t = jnp.pad(x_t, ((0, 0), (0, padded - batch)))

    w1_b = w1.astype(jnp.bfloat16)             # (64, L)
    w2_b = w2.astype(jnp.bfloat16)             # (32, 64)
    b1_c = b1.reshape(h1, 1).astype(jnp.float32)
    b2_c = b2.reshape(h2, 1).astype(jnp.float32)
    w3_c = w3.reshape(h2, 1).astype(jnp.float32)   # column for broadcast reduce
    b3_c = b3.reshape(1, 1).astype(jnp.float32)

    const = lambda i: (0, 0)                   # resident weights/biases

    out = pl.pallas_call(
        generator_kernel,
        out_shape=jax.ShapeDtypeStruct((1, padded), jnp.float32),
        grid=(n_steps,),
        in_specs=[
            pl.BlockSpec((latent_dim, tb), lambda i: (0, i)),  # x^T tile (lane-dense)
            pl.BlockSpec((h1, latent_dim), const),             # W1 (64, L)
            pl.BlockSpec((h1, 1), const),                      # b1 (64, 1)
            pl.BlockSpec((h2, h1), const),                     # W2 (32, 64)
            pl.BlockSpec((h2, 1), const),                      # b2 (32, 1)
            pl.BlockSpec((h2, 1), const),                      # w3 col (32, 1)
            pl.BlockSpec((1, 1), const),                       # b3 (1, 1)
        ],
        out_specs=pl.BlockSpec((1, tb), lambda i: (0, i)),     # lane-dense output
        compiler_params=pltpu.CompilerParams(
            # Batch tiles are independent -> shard across TCs on v7x megacore.
            dimension_semantics=("parallel",),
            # Few-hundred-KiB actual usage; 32 MiB stays inside v7x's 64 MiB
            # physical VMEM while overriding v5e's 16 MiB scoped default.
            vmem_limit_bytes=32 * 1024 * 1024,
        ),
    )(x_t, w1_b, b1_c, w2_b, b2_c, w3_c, b3_c)

    return out[0, :batch][:, None]


def init_params(key, latent_dim):
    """PyTorch-default Linear init (U(+-1/sqrt(fan_in))), PyTorch layout."""
    def linear_init(k, fan_in, fan_out):
        k_w, k_b = jax.random.split(k)
        bound = 1.0 / jnp.sqrt(fan_in)
        w = jax.random.uniform(k_w, (fan_out, fan_in), jnp.float32, -bound, bound)
        b = jax.random.uniform(k_b, (fan_out,), jnp.float32, -bound, bound)
        return w, b

    k1, k2, k3 = jax.random.split(key, 3)
    w1, b1 = linear_init(k1, latent_dim, 64)
    w2, b2 = linear_init(k2, 64, 32)
    w3, b3 = linear_init(k3, 32, 1)
    return (w1, b1, w2, b2, w3, b3)


def reference_forward(x, params):
    """Pure-JAX f32 reference (matches the PyTorch module)."""
    w1, b1, w2, b2, w3, b3 = params
    h = x @ w1.T + b1
    h = jnp.where(h > 0, h, _NEG_SLOPE * h)
    h = h @ w2.T + b2
    h = jnp.where(h > 0, h, _NEG_SLOPE * h)
    return h @ w3.T + b3


if __name__ == "__main__":
    latent_dim = 16

    key = jax.random.PRNGKey(0)
    k_params, k_x1, k_x2 = jax.random.split(key, 3)
    params = init_params(k_params, latent_dim)

    # Small batch (single 128-lane tile after padding).
    x_small = jax.random.normal(k_x1, (8, latent_dim), jnp.float32)
    out_small = jax.block_until_ready(generator_forward(x_small, params))
    ref_small = reference_forward(x_small, params)
    assert out_small.shape == (8, 1), out_small.shape
    # bf16 MXU operands -> ~1e-3 abs error on O(0.1) outputs; loosened tolerance.
    assert jnp.allclose(out_small, ref_small, atol=1e-2, rtol=1e-2), "small-batch mismatch"

    # Multi-tile batch: exercises the grid (2 steps of 1280, zero padding),
    # resident weights, and the even-step v7x split.
    x_big = jax.random.normal(k_x2, (2560, latent_dim), jnp.float32)
    out_big = jax.block_until_ready(generator_forward(x_big, params))
    ref_big = reference_forward(x_big, params)
    assert out_big.shape == (2560, 1), out_big.shape
    assert jnp.allclose(out_big, ref_big, atol=1e-2, rtol=1e-2), "multi-tile mismatch"

    print("KERNEL_OK")
</pallas_src>

<mosaic_0001>
module attributes {stable_mosaic.version = 11 : i64} {
  func.func @generator_kernel(%arg0: i32, %arg1: memref<16x128xbf16, #tpu.memory_space<vmem>>, %arg2: memref<64x16xbf16, #tpu.memory_space<vmem>>, %arg3: memref<64x1xf32, #tpu.memory_space<vmem>>, %arg4: memref<32x64xbf16, #tpu.memory_space<vmem>>, %arg5: memref<32x1xf32, #tpu.memory_space<vmem>>, %arg6: memref<32x1xf32, #tpu.memory_space<vmem>>, %arg7: memref<1x1xf32, #tpu.memory_space<vmem>>, %arg8: memref<1x128xf32, #tpu.memory_space<vmem>>) attributes {dimension_semantics = [#tpu.dimension_semantics<parallel>], iteration_bounds = array<i64: 1>, scalar_prefetch = 0 : i64, scratch_operands = 0 : i64, tpu.core_type = #tpu.core_type<tc>, window_params = [{transform_indices = @transform_0, window_bounds = array<i64: 16, 128>}, {pipeline_mode = #tpu.pipeline_mode<synchronous>, transform_indices = @transform_1, window_bounds = array<i64: 64, 16>}, {pipeline_mode = #tpu.pipeline_mode<synchronous>, transform_indices = @transform_2, window_bounds = array<i64: 64, 1>}, {pipeline_mode = #tpu.pipeline_mode<synchronous>, transform_indices = @transform_3, window_bounds = array<i64: 32, 64>}, {pipeline_mode = #tpu.pipeline_mode<synchronous>, transform_indices = @transform_4, window_bounds = array<i64: 32, 1>}, {pipeline_mode = #tpu.pipeline_mode<synchronous>, transform_indices = @transform_5, window_bounds = array<i64: 32, 1>}, {pipeline_mode = #tpu.pipeline_mode<synchronous>, transform_indices = @transform_6, window_bounds = array<i64: 1, 1>}, {transform_indices = @transform_7, window_bounds = array<i64: 1, 128>}]} {
    %c0 = arith.constant 0 : index
    %c0_0 = arith.constant 0 : index
    %0 = vector.load %arg2[%c0, %c0_0] : memref<64x16xbf16, #tpu.memory_space<vmem>>, vector<64x16xbf16>
    %c0_1 = arith.constant 0 : index
    %c0_2 = arith.constant 0 : index
    %1 = vector.load %arg1[%c0_1, %c0_2] : memref<16x128xbf16, #tpu.memory_space<vmem>>, vector<16x128xbf16>
    %cst = arith.constant dense<0.000000e+00> : vector<64x128xf32>
    %2 = tpu.matmul %0, %1, %cst {dimension_numbers = #tpu.dot_dimension_numbers<[1], [0], [0], [1], [0, 0, 1, 1], [], []>} : vector<64x16xbf16>, vector<16x128xbf16>, vector<64x128xf32> -> vector<64x128xf32>
    %c0_3 = arith.constant 0 : index
    %c0_4 = arith.constant 0 : index
    %3 = vector.load %arg3[%c0_3, %c0_4] : memref<64x1xf32, #tpu.memory_space<vmem>>, vector<64x1xf32>
    %4 = vector.broadcast %3 : vector<64x1xf32> to vector<64x128xf32>
    %5 = arith.addf %2, %4 : vector<64x128xf32>
    %cst_5 = arith.constant 0.000000e+00 : f32
    %6 = vector.broadcast %cst_5 : f32 to vector<64x128xf32>
    %7 = arith.cmpf ogt, %5, %6 : vector<64x128xf32>
    %cst_6 = arith.constant 0.00999999977 : f32
    %8 = vector.broadcast %cst_6 : f32 to vector<64x128xf32>
    %9 = arith.mulf %8, %5 : vector<64x128xf32>
    %10 = arith.select %7, %5, %9 : vector<64x128xi1>, vector<64x128xf32>
    %c0_7 = arith.constant 0 : index
    %c0_8 = arith.constant 0 : index
    %11 = vector.load %arg4[%c0_7, %c0_8] : memref<32x64xbf16, #tpu.memory_space<vmem>>, vector<32x64xbf16>
    %12 = arith.truncf %10 : vector<64x128xf32> to vector<64x128xbf16>
    %cst_9 = arith.constant dense<0.000000e+00> : vector<32x128xf32>
    %13 = tpu.matmul %11, %12, %cst_9 {dimension_numbers = #tpu.dot_dimension_numbers<[1], [0], [0], [1], [0, 0, 1, 1], [], []>} : vector<32x64xbf16>, vector<64x128xbf16>, vector<32x128xf32> -> vector<32x128xf32>
    %c0_10 = arith.constant 0 : index
    %c0_11 = arith.constant 0 : index
    %14 = vector.load %arg5[%c0_10, %c0_11] : memref<32x1xf32, #tpu.memory_space<vmem>>, vector<32x1xf32>
    %15 = vector.broadcast %14 : vector<32x1xf32> to vector<32x128xf32>
    %16 = arith.addf %13, %15 : vector<32x128xf32>
    %cst_12 = arith.constant 0.000000e+00 : f32
    %17 = vector.broadcast %cst_12 : f32 to vector<32x128xf32>
    %18 = arith.cmpf ogt, %16, %17 : vector<32x128xf32>
    %cst_13 = arith.constant 0.00999999977 : f32
    %19 = vector.broadcast %cst_13 : f32 to vector<32x128xf32>
    %20 = arith.mulf %19, %16 : vector<32x128xf32>
    %21 = arith.select %18, %16, %20 : vector<32x128xi1>, vector<32x128xf32>
    %c0_14 = arith.constant 0 : index
    %c0_15 = arith.constant 0 : index
    %22 = vector.load %arg6[%c0_14, %c0_15] : memref<32x1xf32, #tpu.memory_space<vmem>>, vector<32x1xf32>
    %23 = vector.broadcast %22 : vector<32x1xf32> to vector<32x128xf32>
    %24 = arith.mulf %21, %23 : vector<32x128xf32>
    %cst_16 = arith.constant dense<0.000000e+00> : vector<128xf32>
    %25 = vector.multi_reduction <add>, %24, %cst_16 [0] : vector<32x128xf32> to vector<128xf32>
    %26 = vector.shape_cast %25 : vector<128xf32> to vector<1x128xf32>
    %c0_17 = arith.constant 0 : index
    %c0_18 = arith.constant 0 : index
    %27 = vector.load %arg7[%c0_17, %c0_18] : memref<1x1xf32, #tpu.memory_space<vmem>>, vector<1x1xf32>
    %28 = vector.broadcast %27 : vector<1x1xf32> to vector<1x128xf32>
    %29 = arith.addf %26, %28 : vector<1x128xf32>
    %c0_19 = arith.constant 0 : index
    %c0_20 = arith.constant 0 : index
    %30 = vector.load %arg8[%c0_19, %c0_20] : memref<1x128xf32, #tpu.memory_space<vmem>>, vector<1x128xf32>
    tpu.vector_store %arg8[%c0_19, %c0_20], %29 {strides = array<i32>} : memref<1x128xf32, #tpu.memory_space<vmem>>, vector<1x128xf32>,
    return
  }
  func.func @transform_0(%arg0: i32) -> (i32, i32) {
    %c0_i32 = arith.constant 0 : i32
    %c0_i32_0 = arith.constant 0 : i32
    return %c0_i32, %arg0 : i32, i32
  }
  func.func @transform_1(%arg0: i32) -> (i32, i32) {
    %c0_i32 = arith.constant 0 : i32
    %c0_i32_0 = arith.constant 0 : i32
    %c0_i32_1 = arith.constant 0 : i32
    return %c0_i32, %c0_i32_0 : i32, i32
  }
  func.func @transform_2(%arg0: i32) -> (i32, i32) {
    %c0_i32 = arith.constant 0 : i32
    %c0_i32_0 = arith.constant 0 : i32
    %c0_i32_1 = arith.constant 0 : i32
    return %c0_i32, %c0_i32_0 : i32, i32
  }
  func.func @transform_3(%arg0: i32) -> (i32, i32) {
    %c0_i32 = arith.constant 0 : i32
    %c0_i32_0 = arith.constant 0 : i32
    %c0_i32_1 = arith.constant 0 : i32
    return %c0_i32, %c0_i32_0 : i32, i32
  }
  func.func @transform_4(%arg0: i32) -> (i32, i32) {
    %c0_i32 = arith.constant 0 : i32
    %c0_i32_0 = arith.constant 0 : i32
    %c0_i32_1 = arith.constant 0 : i32
    return %c0_i32, %c0_i32_0 : i32, i32
  }
  func.func @transform_5(%arg0: i32) -> (i32, i32) {
    %c0_i32 = arith.constant 0 : i32
    %c0_i32_0 = arith.constant 0 : i32
    %c0_i32_1 = arith.constant 0 : i32
    return %c0_i32, %c0_i32_0 : i32, i32
  }
  func.func @transform_6(%arg0: i32) -> (i32, i32) {
    %c0_i32 = arith.constant 0 : i32
    %c0_i32_0 = arith.constant 0 : i32
    %c0_i32_1 = arith.constant 0 : i32
    return %c0_i32, %c0_i32_0 : i32, i32
  }
  func.func @transform_7(%arg0: i32) -> (i32, i32) {
    %c0_i32 = arith.constant 0 : i32
    %c0_i32_0 = arith.constant 0 : i32
    return %c0_i32, %arg0 : i32, i32
  }
}

</mosaic_0001>

<llo_original>
// kernel: tpu_custom_call.1
$region0: #{tpu_custom_call.1}
  #allocation0 [shape = 'u32[]', space=smem, size = 0x4, offset = 0x4, fixed_abs, tag = 'smem constant byte address 0x4 - core index']
  #allocation1 [shape = 'u32[144,128]{1,0:T(1,128)}', space=vmem, size = 0x12000, scoped, tag = 'internal scratch']
  #allocation2 [shape = 'f32[1,1]{1,0:T(1,128)S(1)}', space=vmem, size = 0x200, scoped, tag = 'scoped memory for tpu_custom_call.1']
  %s0 = inlined_call_operand.vmem [shape: bf16[16,128], index: 0, kind: input, shape index: {}]
  %s1 = inlined_call_operand.vmem [shape: bf16[64,16], index: 1, kind: input, shape index: {}]
  %s2 = inlined_call_operand.vmem [shape: f32[64,1], index: 2, kind: input, shape index: {}]
  %s3 = inlined_call_operand.vmem [shape: bf16[32,64], index: 3, kind: input, shape index: {}]
  %s4 = inlined_call_operand.vmem [shape: f32[32,1], index: 4, kind: input, shape index: {}]
  %s5 = inlined_call_operand.vmem [shape: f32[32,1], index: 5, kind: input, shape index: {}]
  %s6 = inlined_call_operand.<no memory space> [shape: f32[1,1], index: 6, kind: input, shape index: {}]
  %s7 = inlined_call_operand.hbm [shape: f32[1,128], index: 7, kind: output, shape index: {}]
  %s8 = sld [smem:[#allocation0]]
  $region38: #{tpu_custom_call.1} parent=0
    _
  %s10 = ssub.s32 1, %s8
  %s11 = scalar_select 0, %s10, %s8
  %v12 = vstv %s6
  %13 = vst [vmem:[#allocation2] sm:$0x1] %v12
  $region1: #{tpu_custom_call.1} parent=0
    #allocation3 [shape = 'u8[512]{0}', space=vmem, size = 0x400, scoped, tag = 'output window, operand 0, single buffered']
    #allocation4 [shape = 's32[1]{0}', space=sflag, size = 0x4, scoped, tag = 'scoped memory for tpu_custom_call.1']
    %14 = vsyncpa [#allocation4], 0
    // Predicated region
    $region2: #{tpu_custom_call.1} parent=1 // pred_check
      _
    $region3: #{tpu_custom_call.1} parent=1 // pred_check_branch
      %16 = sbr.rel (0) target = $region5
    $region4: #{tpu_custom_call.1} parent=1 // pred_region
      _
    $region5: #{tpu_custom_call.1} parent=1 // pred_fallthru
      _
    // Predicated region
    $region6: #{tpu_custom_call.1} parent=1 // pred_check
      _
    $region7: #{tpu_custom_call.1} parent=1 // pred_check_branch
      %18 = sbr.rel (0) target = $region9
    $region8: #{tpu_custom_call.1} parent=1 // pred_region
      _
    $region9: #{tpu_custom_call.1} parent=1 // pred_fallthru
      _
    // Predicated region
    $region10: #{tpu_custom_call.1} parent=1 // pred_check
      _
    $region11: #{tpu_custom_call.1} parent=1 // pred_check_branch
      %20 = sbr.rel (0) target = $region13
    $region12: #{tpu_custom_call.1} parent=1 // pred_region
      _
    $region13: #{tpu_custom_call.1} parent=1 // pred_fallthru
      _
    // Predicated region
    $region14: #{tpu_custom_call.1} parent=1 // pred_check
      _
    $region15: #{tpu_custom_call.1} parent=1 // pred_check_branch
      %22 = sbr.rel (0) target = $region17
    $region16: #{tpu_custom_call.1} parent=1 // pred_region
      _
    $region17: #{tpu_custom_call.1} parent=1 // pred_fallthru
      _
    // Predicated region
    $region18: #{tpu_custom_call.1} parent=1 // pred_check
      _
    $region19: #{tpu_custom_call.1} parent=1 // pred_check_branch
      %24 = sbr.rel (0) target = $region21
    $region20: #{tpu_custom_call.1} parent=1 // pred_region
      _
    $region21: #{tpu_custom_call.1} parent=1 // pred_fallthru
      _
    // Predicated region
    $region22: #{tpu_custom_call.1} parent=1 // pred_check
      _
    $region23: #{tpu_custom_call.1} parent=1 // pred_check_branch
      %26 = sbr.rel (0) target = $region25
    $region24: #{tpu_custom_call.1} parent=1 // pred_region
      _
    $region25: #{tpu_custom_call.1} parent=1 // pred_fallthru
      _
    // Predicated region
    $region26: #{tpu_custom_call.1} parent=1 // pred_check
      _
    $region27: #{tpu_custom_call.1} parent=1 // pred_check_branch
      %28 = sbr.rel (0) target = $region29
    $region28: #{tpu_custom_call.1} parent=1 // pred_region
      _
    $region29: #{tpu_custom_call.1} parent=1 // pred_fallthru
      _
    %v30 = vld [vmem:[%s1] sm:$0xf]
    %v31 = vld [vmem:[%s1 + $0x4] sm:$0xf]
    %v32 = vld [vmem:[%s1 + $0x8] sm:$0xf]
    %v33 = vld [vmem:[%s1 + $0xc] sm:$0xf]
    %v34 = vld [vmem:[%s1 + $0x10] sm:$0xf]
    %v35 = vld [vmem:[%s1 + $0x14] sm:$0xf]
    %v36 = vld [vmem:[%s1 + $0x18] sm:$0xf]
    %v37 = vld [vmem:[%s1 + $0x1c] sm:$0xf]
    %v38 = vld [vmem:[%s0] sm:$0xf]
    %v39 = vld [vmem:[%s0 + $0x4] sm:$0xf]
    %v40 = vld [vmem:[%s2] sm:$0xff]
    %v41 = vld [vmem:[%s2 + $0x8] sm:$0xff]
    %v42 = vld [vmem:[%s2 + $0x10] sm:$0xff]
    %v43 = vld [vmem:[%s2 + $0x18] sm:$0xff]
    %v44 = vld [vmem:[%s2 + $0x20] sm:$0xff]
    %v45 = vld [vmem:[%s2 + $0x28] sm:$0xff]
    %v46 = vld [vmem:[%s2 + $0x30] sm:$0xff]
    %v47 = vld [vmem:[%s2 + $0x38] sm:$0xff]
    %49 = vset.pattern.permute.xlu0 0
    %50 = vperm.xlu0 %49, %v40
    %v51 = vpop.permute.xlu0 %50
    %54 = vset.pattern.permute.xlu0 0
    %55 = vperm.xlu0 %54, %v41
    %v56 = vpop.permute.xlu0 %55
    %59 = vset.pattern.permute.xlu0 0
    %60 = vperm.xlu0 %59, %v42
    %v61 = vpop.permute.xlu0 %60
    %64 = vset.pattern.permute.xlu0 0
    %65 = vperm.xlu0 %64, %v43
    %v66 = vpop.permute.xlu0 %65
    %69 = vset.pattern.permute.xlu0 0
    %70 = vperm.xlu0 %69, %v44
    %v71 = vpop.permute.xlu0 %70
    %74 = vset.pattern.permute.xlu0 0
    %75 = vperm.xlu0 %74, %v45
    %v76 = vpop.permute.xlu0 %75
    %79 = vset.pattern.permute.xlu0 0
    %80 = vperm.xlu0 %79, %v46
    %v81 = vpop.permute.xlu0 %80
    %84 = vset.pattern.permute.xlu0 0
    %85 = vperm.xlu0 %84, %v47
    %v86 = vpop.permute.xlu0 %85
    %v96 = vunpack.c.l.b16 %v30
    %v97 = vunpack.c.l.b16 %v31
    %v98 = vunpack.c.l.b16 %v32
    %v99 = vunpack.c.l.b16 %v33
    %v100 = vunpack.c.l.b16 %v34
    %v101 = vunpack.c.l.b16 %v35
    %v102 = vunpack.c.l.b16 %v36
    %v103 = vunpack.c.l.b16 %v37
    %v104 = vpack.c.b16 %v97, %v96
    %v105 = vpack.c.b16 %v99, %v98
    %v106 = vpack.c.b16 %v101, %v100
    %v107 = vpack.c.b16 %v103, %v102
    %v110 = vunpack.c.l.b16 %v38
    %v111 = vunpack.c.l.b16 %v39
    %v112 = vpack.c.b16 %v111, %v110
    %vm114 = vcmask 130048
    %v116 = vsel %vm114, %v104, 0
    %v119 = vsel %vm114, %v105, 0
    %v122 = vsel %vm114, %v106, 0
    %v125 = vsel %vm114, %v107, 0
    %127 = vmatprep.subr.bf16.mxu0 0
    %128 = vmatpush1.bf16.msra.mxu0 %v112
    %129 = vmatprep.subr.bf16.mxu0 0
    %130 = vmatpush1.bf16.msra.mxu0 0
    %131 = vmatprep.subr.bf16.mxu0 0
    %132 = vmatpush1.bf16.msra.mxu0 0
    %133 = vmatprep.subr.bf16.mxu0 0
    %134 = vmatpush1.bf16.msra.mxu0 0
    %135 = vmatprep.subr.bf16.mxu0 0
    %136 = vmatpush1.bf16.msra.mxu0 0
    %137 = vmatprep.subr.bf16.mxu0 0
    %138 = vmatpush1.bf16.msra.mxu0 0
    %139 = vmatprep.subr.bf16.mxu0 0
    %140 = vmatpush1.bf16.msra.mxu0 0
    %141 = vmatprep.subr.bf16.mxu0 0
    %142 = vmatpush1.bf16.msra.mxu0 0
    %143 = vmatprep.subr.bf16.mxu0 0
    %144 = vmatpush1.bf16.msra.mxu0 0
    %145 = vmatprep.subr.bf16.mxu0 0
    %146 = vmatpush1.bf16.msra.mxu0 0
    %147 = vmatprep.subr.bf16.mxu0 0
    %148 = vmatpush1.bf16.msra.mxu0 0
    %149 = vmatprep.subr.bf16.mxu0 0
    %150 = vmatpush1.bf16.msra.mxu0 0
    %151 = vmatprep.subr.bf16.mxu0 0
    %152 = vmatpush1.bf16.msra.mxu0 0
    %153 = vmatprep.subr.bf16.mxu0 0
    %154 = vmatpush1.bf16.msra.mxu0 0
    %155 = vmatprep.subr.bf16.mxu0 0
    %156 = vmatpush1.bf16.msra.mxu0 0
    %157 = vmatprep.subr.bf16.mxu0 0
    %158 = vmatpush1.bf16.msra.mxu0 0
    %159 = vmatprep.mubr.bf16.mxu0 0
    %160 = vmatmul.mubr.bf16.gmra.mrb[0].mxu0 %v116
    %v161 = vpop.f32.mrb[0].mxu0
    %v162 = vadd.f32 %v51, %v161
    %v163 = vpop.f32.mrb[0].mxu0
    %v164 = vpop.f32.mrb[0].mxu0
    %v165 = vadd.f32 %v56, %v164
    %v166 = vpop.f32.mrb[0].mxu0
    %167 = vmatprep.mubr.bf16.mxu0 0
    %168 = vmatmul.mubr.bf16.gmra.mrb[0].mxu0 %v119
    %v169 = vpop.f32.mrb[0].mxu0
    %v170 = vadd.f32 %v61, %v169
    %v171 = vpop.f32.mrb[0].mxu0
    %v172 = vpop.f32.mrb[0].mxu0
    %v173 = vadd.f32 %v66, %v172
    %v174 = vpop.f32.mrb[0].mxu0
    %175 = vmatprep.mubr.bf16.mxu0 0
    %176 = vmatmul.mubr.bf16.gmra.mrb[0].mxu0 %v122
    %v177 = vpop.f32.mrb[0].mxu0
    %v178 = vadd.f32 %v71, %v177
    %v179 = vpop.f32.mrb[0].mxu0
    %v180 = vpop.f32.mrb[0].mxu0
    %v181 = vadd.f32 %v76, %v180
    %v182 = vpop.f32.mrb[0].mxu0
    %183 = vmatprep.mubr.bf16.mxu0 0
    %184 = vmatmul.mubr.bf16.gmra.mrb[0].mxu0 %v125
    %v185 = vpop.f32.mrb[0].mxu0
    %v186 = vadd.f32 %v81, %v185
    %v187 = vpop.f32.mrb[0].mxu0
    %v188 = vpop.f32.mrb[0].mxu0
    %v189 = vadd.f32 %v86, %v188
    %v190 = vpop.f32.mrb[0].mxu0
    %191 = vdwg.mxu0
    %vm192 = vcmp.gt.f32.partialorder %v162, 0.0
    %vm193 = vcmp.gt.f32.partialorder %v165, 0.0
    %vm194 = vcmp.gt.f32.partialorder %v170, 0.0
    %vm195 = vcmp.gt.f32.partialorder %v173, 0.0
    %vm196 = vcmp.gt.f32.partialorder %v178, 0.0
    %vm197 = vcmp.gt.f32.partialorder %v181, 0.0
    %vm198 = vcmp.gt.f32.partialorder %v186, 0.0
    %vm199 = vcmp.gt.f32.partialorder %v189, 0.0
    %v200 = vmul.f32 %v162, 0.01
    %v201 = vmul.f32 %v165, 0.01
    %v202 = vmul.f32 %v170, 0.01
    %v203 = vmul.f32 %v173, 0.01
    %v204 = vmul.f32 %v178, 0.01
    %v205 = vmul.f32 %v181, 0.01
    %v206 = vmul.f32 %v186, 0.01
    %v207 = vmul.f32 %v189, 0.01
    %v208 = vsel %vm192, %v162, %v200
    %v209 = vsel %vm193, %v165, %v201
    %v210 = vsel %vm194, %v170, %v202
    %v211 = vsel %vm195, %v173, %v203
    %v212 = vsel %vm196, %v178, %v204
    %v213 = vsel %vm197, %v181, %v205
    %v214 = vsel %vm198, %v186, %v206
    %v215 = vsel %vm199, %v189, %v207
    %v216 = vld [vmem:[%s3] sm:$0xf]
    %v217 = vld [vmem:[%s3 + $0x4] sm:$0xf]
    %v218 = vld [vmem:[%s3 + $0x8] sm:$0xf]
    %v219 = vld [vmem:[%s3 + $0xc] sm:$0xf]
    %v220 = vpack.c.bf16 %v209, %v208
    %v221 = vpack.c.bf16 %v211, %v210
    %v222 = vpack.c.bf16 %v213, %v212
    %v223 = vpack.c.bf16 %v215, %v214
    %v224 = vld [vmem:[%s4] sm:$0xff]
    %v225 = vld [vmem:[%s4 + $0x8] sm:$0xff]
    %v226 = vld [vmem:[%s4 + $0x10] sm:$0xff]
    %v227 = vld [vmem:[%s4 + $0x18] sm:$0xff]
    %229 = vset.pattern.permute.xlu0 0
    %230 = vperm.xlu0 %229, %v224
    %v231 = vpop.permute.xlu0 %230
    %234 = vset.pattern.permute.xlu0 0
    %235 = vperm.xlu0 %234, %v225
    %v236 = vpop.permute.xlu0 %235
    %239 = vset.pattern.permute.xlu0 0
    %240 = vperm.xlu0 %239, %v226
    %v241 = vpop.permute.xlu0 %240
    %244 = vset.pattern.permute.xlu0 0
    %245 = vperm.xlu0 %244, %v227
    %v246 = vpop.permute.xlu0 %245
    %v252 = vunpack.c.l.b16 %v216
    %v253 = vunpack.c.l.b16 %v217
    %v254 = vunpack.c.l.b16 %v218
    %v255 = vunpack.c.l.b16 %v219
    %v256 = vpack.c.b16 %v253, %v252
    %v257 = vpack.c.b16 %v255, %v254
    %vm258 = vcmask 523264
    %v260 = vsel %vm258, %v256, 0
    %v263 = vsel %vm258, %v257, 0
    %265 = vmatprep.subr.bf16.mxu0 0
    %266 = vmatpush1.bf16.msra.mxu0 %v220
    %267 = vmatprep.subr.bf16.mxu0 0
    %268 = vmatpush1.bf16.msra.mxu0 %v221
    %269 = vmatprep.subr.bf16.mxu0 0
    %270 = vmatpush1.bf16.msra.mxu0 %v222
    %271 = vmatprep.subr.bf16.mxu0 0
    %272 = vmatpush1.bf16.msra.mxu0 %v223
    %273 = vmatprep.subr.bf16.mxu0 0
    %274 = vmatpush1.bf16.msra.mxu0 0
    %275 = vmatprep.subr.bf16.mxu0 0
    %276 = vmatpush1.bf16.msra.mxu0 0
    %277 = vmatprep.subr.bf16.mxu0 0
    %278 = vmatpush1.bf16.msra.mxu0 0
    %279 = vmatprep.subr.bf16.mxu0 0
    %280 = vmatpush1.bf16.msra.mxu0 0
    %281 = vmatprep.subr.bf16.mxu0 0
    %282 = vmatpush1.bf16.msra.mxu0 0
    %283 = vmatprep.subr.bf16.mxu0 0
    %284 = vmatpush1.bf16.msra.mxu0 0
    %285 = vmatprep.subr.bf16.mxu0 0
    %286 = vmatpush1.bf16.msra.mxu0 0
    %287 = vmatprep.subr.bf16.mxu0 0
    %288 = vmatpush1.bf16.msra.mxu0 0
    %289 = vmatprep.subr.bf16.mxu0 0
    %290 = vmatpush1.bf16.msra.mxu0 0
    %291 = vmatprep.subr.bf16.mxu0 0
    %292 = vmatpush1.bf16.msra.mxu0 0
    %293 = vmatprep.subr.bf16.mxu0 0
    %294 = vmatpush1.bf16.msra.mxu0 0
    %295 = vmatprep.subr.bf16.mxu0 0
    %296 = vmatpush1.bf16.msra.mxu0 0
    %297 = vmatprep.mubr.bf16.mxu0 0
    %298 = vmatmul.mubr.bf16.gmra.mrb[0].mxu0 %v260
    %v299 = vpop.f32.mrb[0].mxu0
    %v300 = vadd.f32 %v231, %v299
    %v301 = vpop.f32.mrb[0].mxu0
    %v302 = vpop.f32.mrb[0].mxu0
    %v303 = vadd.f32 %v236, %v302
    %v304 = vpop.f32.mrb[0].mxu0
    %305 = vmatprep.mubr.bf16.mxu0 0
    %306 = vmatmul.mubr.bf16.gmra.mrb[0].mxu0 %v263
    %v307 = vpop.f32.mrb[0].mxu0
    %v308 = vadd.f32 %v241, %v307
    %v309 = vpop.f32.mrb[0].mxu0
    %v310 = vpop.f32.mrb[0].mxu0
    %v311 = vadd.f32 %v246, %v310
    %v312 = vpop.f32.mrb[0].mxu0
    %313 = vdwg.mxu0
    %vm314 = vcmp.gt.f32.partialorder %v300, 0.0
    %vm315 = vcmp.gt.f32.partialorder %v303, 0.0
    %vm316 = vcmp.gt.f32.partialorder %v308, 0.0
    %vm317 = vcmp.gt.f32.partialorder %v311, 0.0
    %v318 = vmul.f32 %v300, 0.01
    %v319 = vmul.f32 %v303, 0.01
    %v320 = vmul.f32 %v308, 0.01
    %v321 = vmul.f32 %v311, 0.01
    %v322 = vsel %vm314, %v300, %v318
    %v323 = vsel %vm315, %v303, %v319
    %v324 = vsel %vm316, %v308, %v320
    %v325 = vsel %vm317, %v311, %v321
    %v326 = vld [vmem:[%s5] sm:$0xff]
    %v327 = vld [vmem:[%s5 + $0x8] sm:$0xff]
    %v328 = vld [vmem:[%s5 + $0x10] sm:$0xff]
    %v329 = vld [vmem:[%s5 + $0x18] sm:$0xff]
    %331 = vset.pattern.permute.xlu0 0
    %332 = vperm.xlu0 %331, %v326
    %v333 = vpop.permute.xlu0 %332
    %336 = vset.pattern.permute.xlu0 0
    %337 = vperm.xlu0 %336, %v327
    %v338 = vpop.permute.xlu0 %337
    %341 = vset.pattern.permute.xlu0 0
    %342 = vperm.xlu0 %341, %v328
    %v343 = vpop.permute.xlu0 %342
    %346 = vset.pattern.permute.xlu0 0
    %347 = vperm.xlu0 %346, %v329
    %v348 = vpop.permute.xlu0 %347
    %v350 = vmul.f32 %v322, %v333
    %v351 = vmul.f32 %v323, %v338
    %v352 = vmul.f32 %v324, %v343
    %v353 = vmul.f32 %v325, %v348
    %v354 = vadd.f32 %v350, %v351
    %v355 = vadd.f32 %v354, %v352
    %v356 = vadd.f32 %v355, %v353
    %v357 = vrot.slane %v356, 4
    %v358 = vadd.f32 %v356, %v357
    %v359 = vrot.slane %v358, 2
    %v360 = vadd.f32 %v358, %v359
    %v361 = vrot.slane %v360, 1
    %v362 = vadd.f32 %v360, %v361
    %v363 = vld [vmem:[#allocation2] sm:$0x1]
    %365 = vset.pattern.permute.xlu0 0
    %366 = vperm.xlu0 %365, %v363
    %v367 = vpop.permute.xlu0 %366
    %v369 = vlaneseq
    %v370 = vshrl.u32 %v369, 7
    %v371 = vsub.s32 0, %v370
    %v372 = vrot.slane %v367, %v371
    %v373 = vadd.f32 %v362, %v372
    %374 = vst [vmem:[#allocation3] sm:$0x1] %v373
    // Predicated region
    $region30: #{tpu_custom_call.1} parent=1 // pred_check
      _
    $region31: #{tpu_custom_call.1} parent=1 // pred_check_branch
      %376 = sbr.rel (0) target = $region33
    $region32: #{tpu_custom_call.1} parent=1 // pred_region
      %s378 = ssub.s32 16, 16
      %379 = vsyncadd [#allocation4], %s378
      %s381 = sshll.u32 [#allocation3], 4
      %s382 = int_to_ptr.vmem [resolvable:$true] %s381
      %384 = dma.vmem_to_hbm [thread:$0]  %s382, 16, %s7, [#allocation4]
    $region33: #{tpu_custom_call.1} parent=1 // pred_fallthru
      _
    // Predicated region
    $region34: #{tpu_custom_call.1} parent=1 // pred_check
      _
    $region35: #{tpu_custom_call.1} parent=1 // pred_check_branch
      %386 = sbr.rel (0) target = $region37
    $region36: #{tpu_custom_call.1} parent=1 // pred_region
      %387 = dma.done [#allocation4], 16
    $region37: #{tpu_custom_call.1} parent=1 // pred_fallthru
      _
    %388 = vsyncpa [#allocation4], 1

</llo_original>
